<compile_context>
chip_gen: v5e
topology: v5e:2x2
jax: 0.10.0
libtpu: 0.0.40
codegen_flags: <defaults>
</compile_context>

<pallas_src>
import functools

import jax
import jax.numpy as jnp
from jax.experimental import pallas as pl
from jax.experimental.pallas import tpu as pltpu

# ---------------- config (scaled-down roberta-base) ----------------
HIDDEN = 32
NUM_HEADS = 2
HEAD_DIM = HIDDEN // NUM_HEADS
NUM_LAYERS = 2
INTERMEDIATE = 64
VOCAB = 100
MAX_POS = 40
PAD_ID = 1            # RoBERTa padding_idx
LN_EPS = 1e-5
NUM_CLASSES = 3

_VMEM = pl.BlockSpec(memory_space=pltpu.MemorySpace.VMEM)


# ---------------- shared in-kernel helpers ----------------
def _ln(x, g, b):
    # f32 layernorm over the last dim
    mean = jnp.mean(x, axis=-1, keepdims=True)
    var = jnp.mean((x - mean) ** 2, axis=-1, keepdims=True)
    return (x - mean) * jax.lax.rsqrt(var + LN_EPS) * g + b


def _gelu(x):
    # exact (erf) GELU, as in HF RoBERTa, in f32
    return 0.5 * x * (1.0 + jax.lax.erf(x * 0.7071067811865476))


# ---------------- Pallas kernels ----------------
def _layernorm_kernel(x_ref, g_ref, b_ref, o_ref):
    o_ref[...] = _ln(x_ref[...].astype(jnp.float32),
                     g_ref[...], b_ref[...]).astype(o_ref.dtype)


def layernorm(x, g, b):
    """x: (M, H) -> (M, H). Used once for the embedding layernorm."""
    M, H = x.shape
    return pl.pallas_call(
        _layernorm_kernel,
        out_shape=jax.ShapeDtypeStruct((M, H), x.dtype),
        in_specs=[_VMEM, _VMEM, _VMEM],
        out_specs=_VMEM,
    )(x, g.reshape(1, H), b.reshape(1, H))


def _encoder_layer_kernel(h_ref, mask_ref,
                          wqkv_ref, bqkv_ref, wo_ref, bo_ref,
                          ln1g_ref, ln1b_ref,
                          wi_ref, bi_ref, wo2_ref, bo2_ref,
                          ln2g_ref, ln2b_ref,
                          o_ref, *, batch, seq, num_heads, head_dim):
    """One full transformer encoder layer, fully resident in VMEM.

    h_ref:    (B*S, H) f32 hidden state
    mask_ref: (B, S)   f32 additive attention mask (0 keep / -1e9 masked)
    weights:  pre-transposed (K, N) bf16; biases / LN params (1, N) f32
    """
    H = num_heads * head_dim
    scale = 1.0 / (head_dim ** 0.5)

    h = h_ref[...].astype(jnp.float32)                       # (M, H)
    mask = mask_ref[...]                                     # (B, S)

    # ---- fused QKV projection: one wide matmul, bf16 operands, f32 accum ----
    qkv = jnp.dot(h.astype(jnp.bfloat16), wqkv_ref[...],
                  preferred_element_type=jnp.float32) + bqkv_ref[...]   # (M, 3H)
    q = qkv[:, 0 * H:1 * H]
    k = qkv[:, 1 * H:2 * H]
    v = qkv[:, 2 * H:3 * H]

    # ---- per (batch, head) attention; head split/merge done in-kernel ----
    ctx_rows = []
    for b in range(batch):
        rs = slice(b * seq, (b + 1) * seq)
        mask_b = mask[b:b + 1, :]                            # (1, S)
        head_outs = []
        for hd in range(num_heads):
            cs = slice(hd * head_dim, (hd + 1) * head_dim)
            qh = q[rs, cs].astype(jnp.bfloat16)              # (S, D)
            kh = k[rs, cs].astype(jnp.bfloat16)
            vh = v[rs, cs].astype(jnp.bfloat16)
            # scores = qh @ kh^T (contract last dims, no explicit transpose)
            s = jax.lax.dot_general(
                qh, kh, (((1,), (1,)), ((), ())),
                preferred_element_type=jnp.float32) * scale  # (S, S)
            s = s + mask_b
            m = jnp.max(s, axis=-1, keepdims=True)
            e = jnp.exp(s - m)
            denom = jnp.sum(e, axis=-1, keepdims=True)
            p = e * pl.reciprocal(denom, approx=True)        # EUP reciprocal
            head_outs.append(
                jnp.dot(p.astype(jnp.bfloat16), vh,
                        preferred_element_type=jnp.float32))  # (S, D)
        ctx_rows.append(jnp.concatenate(head_outs, axis=-1))  # (S, H)
    ctx = jnp.concatenate(ctx_rows, axis=0)                   # (M, H)

    # ---- attention output projection + residual + LayerNorm epilogue ----
    attn_out = jnp.dot(ctx.astype(jnp.bfloat16), wo_ref[...],
                       preferred_element_type=jnp.float32) + bo_ref[...]
    h1 = _ln(h + attn_out, ln1g_ref[...], ln1b_ref[...])      # f32

    # ---- FFN (GELU) + residual + LayerNorm ----
    inter = jnp.dot(h1.astype(jnp.bfloat16), wi_ref[...],
                    preferred_element_type=jnp.float32) + bi_ref[...]
    inter = _gelu(inter)
    ffn_out = jnp.dot(inter.astype(jnp.bfloat16), wo2_ref[...],
                      preferred_element_type=jnp.float32) + bo2_ref[...]
    h2 = _ln(h1 + ffn_out, ln2g_ref[...], ln2b_ref[...])

    o_ref[...] = h2.astype(o_ref.dtype)


def encoder_layer(h2d, ext_mask, p, batch, seq):
    M, H = h2d.shape
    kernel = functools.partial(_encoder_layer_kernel, batch=batch, seq=seq,
                               num_heads=NUM_HEADS, head_dim=HEAD_DIM)
    return pl.pallas_call(
        kernel,
        out_shape=jax.ShapeDtypeStruct((M, H), h2d.dtype),
        in_specs=[_VMEM] * 14,
        out_specs=_VMEM,
    )(h2d, ext_mask,
      p["wqkv"], p["bqkv"], p["wo"], p["bo"], p["ln1_g"], p["ln1_b"],
      p["wi"], p["bi"], p["wo2"], p["bo2"], p["ln2_g"], p["ln2_b"])


def _head_kernel(cls_ref, pw_ref, pb_ref, fw_ref, fb_ref, o_ref):
    """Fused pooler (tanh dense on CLS) + classifier linear."""
    cls = cls_ref[...].astype(jnp.bfloat16)
    pooled = jnp.tanh(jnp.dot(cls, pw_ref[...],
                              preferred_element_type=jnp.float32) + pb_ref[...])
    logits = jnp.dot(pooled.astype(jnp.bfloat16), fw_ref[...],
                     preferred_element_type=jnp.float32) + fb_ref[...]
    o_ref[...] = logits.astype(o_ref.dtype)


def pooler_classifier(cls, params):
    B = cls.shape[0]
    return pl.pallas_call(
        _head_kernel,
        out_shape=jax.ShapeDtypeStruct((B, NUM_CLASSES), jnp.float32),
        in_specs=[_VMEM] * 5,
        out_specs=_VMEM,
    )(cls, params["pooler_w"], params["pooler_b"],
      params["fc_w"], params["fc_b"])


# ---------------- model (glue around the kernels) ----------------
def roberta_classifier_forward(params, input_ids, attention_mask):
    B, S = input_ids.shape

    # --- RoBERTa embeddings (position ids skip padding, offset by pad_id) ---
    not_pad = (input_ids != PAD_ID).astype(jnp.int32)
    position_ids = jnp.cumsum(not_pad, axis=1) * not_pad + PAD_ID
    word = jnp.take(params["word_emb"], input_ids, axis=0)
    pos = jnp.take(params["pos_emb"], position_ids, axis=0)
    tok = params["type_emb"][0][None, None, :]           # token_type_ids == 0
    h2d = (word + pos + tok).reshape(B * S, HIDDEN)
    h2d = layernorm(h2d, params["emb_ln_g"], params["emb_ln_b"])

    # additive attention mask (0 for keep, -1e9 for masked), shape (B, S)
    ext_mask = (1.0 - attention_mask.astype(jnp.float32)) * -1e9

    for layer_params in params["layers"]:
        h2d = encoder_layer(h2d, ext_mask, layer_params, B, S)

    # --- pooler(tanh on CLS) + classifier head, one fused kernel ---
    cls = h2d.reshape(B, S, HIDDEN)[:, 0, :]              # (B, H)
    return pooler_classifier(cls, params)


# ---------------- deterministic parameter init ----------------
def init_params(key):
    ks = jax.random.split(key, 5 + NUM_LAYERS)

    def w(k, shape):
        # weights stored pre-transposed to (K, N) and in bf16 (MXU operands)
        return (0.02 * jax.random.normal(k, shape, jnp.float32)).astype(jnp.bfloat16)

    def wf32(k, shape):
        return 0.02 * jax.random.normal(k, shape, jnp.float32)

    params = {
        "word_emb": wf32(ks[0], (VOCAB, HIDDEN)),
        "pos_emb": wf32(ks[1], (MAX_POS, HIDDEN)),
        "type_emb": wf32(ks[2], (1, HIDDEN)),
        "emb_ln_g": jnp.ones((HIDDEN,), jnp.float32),
        "emb_ln_b": jnp.zeros((HIDDEN,), jnp.float32),
        "pooler_w": w(ks[3], (HIDDEN, HIDDEN)),
        "pooler_b": jnp.zeros((1, HIDDEN), jnp.float32),
        "fc_w": w(ks[4], (HIDDEN, NUM_CLASSES)),
        "fc_b": jnp.zeros((1, NUM_CLASSES), jnp.float32),
        "layers": [],
    }
    for i in range(NUM_LAYERS):
        lk = jax.random.split(ks[5 + i], 6)
        params["layers"].append({
            # Q/K/V fused into a single (H, 3H) weight
            "wqkv": jnp.concatenate([w(lk[0], (HIDDEN, HIDDEN)),
                                     w(lk[1], (HIDDEN, HIDDEN)),
                                     w(lk[2], (HIDDEN, HIDDEN))], axis=1),
            "bqkv": jnp.zeros((1, 3 * HIDDEN), jnp.float32),
            "wo": w(lk[3], (HIDDEN, HIDDEN)),
            "bo": jnp.zeros((1, HIDDEN), jnp.float32),
            "ln1_g": jnp.ones((1, HIDDEN), jnp.float32),
            "ln1_b": jnp.zeros((1, HIDDEN), jnp.float32),
            "wi": w(lk[4], (HIDDEN, INTERMEDIATE)),
            "bi": jnp.zeros((1, INTERMEDIATE), jnp.float32),
            "wo2": w(lk[5], (INTERMEDIATE, HIDDEN)),
            "bo2": jnp.zeros((1, HIDDEN), jnp.float32),
            "ln2_g": jnp.ones((1, HIDDEN), jnp.float32),
            "ln2_b": jnp.zeros((1, HIDDEN), jnp.float32),
        })
    return params


if __name__ == "__main__":
    key = jax.random.PRNGKey(0)
    pkey, ikey = jax.random.split(key)

    params = init_params(pkey)

    B, S = 2, 8
    input_ids = jax.random.randint(ikey, (B, S), 2, VOCAB, dtype=jnp.int32)
    # make the tail of the second sequence padding
    input_ids = input_ids.at[1, 6:].set(PAD_ID)
    attention_mask = (input_ids != PAD_ID).astype(jnp.int32)

    fwd = jax.jit(roberta_classifier_forward)
    logits = jax.block_until_ready(fwd(params, input_ids, attention_mask))

    assert logits.shape == (B, NUM_CLASSES)
    assert bool(jnp.all(jnp.isfinite(logits)))
    print("KERNEL_OK")
</pallas_src>

<mosaic_0001>
module attributes {stable_mosaic.version = 11 : i64} {
  func.func @_layernorm_kernel(%arg0: memref<16x32xf32, #tpu.memory_space<vmem>>, %arg1: memref<1x32xf32, #tpu.memory_space<vmem>>, %arg2: memref<1x32xf32, #tpu.memory_space<vmem>>, %arg3: memref<16x32xf32, #tpu.memory_space<vmem>>) attributes {dimension_semantics = [], scalar_prefetch = 0 : i64, scratch_operands = 0 : i64, tpu.core_type = #tpu.core_type<tc>} {
    %c0 = arith.constant 0 : index
    %c0_0 = arith.constant 0 : index
    %0 = vector.load %arg0[%c0, %c0_0] : memref<16x32xf32, #tpu.memory_space<vmem>>, vector<16x32xf32>
    %c0_1 = arith.constant 0 : index
    %c0_2 = arith.constant 0 : index
    %1 = vector.load %arg1[%c0_1, %c0_2] : memref<1x32xf32, #tpu.memory_space<vmem>>, vector<1x32xf32>
    %c0_3 = arith.constant 0 : index
    %c0_4 = arith.constant 0 : index
    %2 = vector.load %arg2[%c0_3, %c0_4] : memref<1x32xf32, #tpu.memory_space<vmem>>, vector<1x32xf32>
    %cst = arith.constant dense<0.000000e+00> : vector<16xf32>
    %3 = vector.multi_reduction <add>, %0, %cst [1] : vector<16x32xf32> to vector<16xf32>
    %4 = vector.shape_cast %3 : vector<16xf32> to vector<16x1xf32>
    %cst_5 = arith.constant 3.200000e+01 : f32
    %5 = vector.broadcast %cst_5 : f32 to vector<16x1xf32>
    %6 = arith.divf %4, %5 : vector<16x1xf32>
    %7 = vector.broadcast %6 : vector<16x1xf32> to vector<16x32xf32>
    %8 = arith.subf %0, %7 : vector<16x32xf32>
    %9 = arith.mulf %8, %8 : vector<16x32xf32>
    %cst_6 = arith.constant dense<0.000000e+00> : vector<16xf32>
    %10 = vector.multi_reduction <add>, %9, %cst_6 [1] : vector<16x32xf32> to vector<16xf32>
    %11 = vector.shape_cast %10 : vector<16xf32> to vector<16x1xf32>
    %cst_7 = arith.constant 3.200000e+01 : f32
    %12 = vector.broadcast %cst_7 : f32 to vector<16x1xf32>
    %13 = arith.divf %11, %12 : vector<16x1xf32>
    %14 = vector.broadcast %6 : vector<16x1xf32> to vector<16x32xf32>
    %15 = arith.subf %0, %14 : vector<16x32xf32>
    %cst_8 = arith.constant 9.99999974E-6 : f32
    %16 = vector.broadcast %cst_8 : f32 to vector<16x1xf32>
    %17 = arith.addf %13, %16 : vector<16x1xf32>
    %18 = math.rsqrt %17 : vector<16x1xf32>
    %19 = vector.broadcast %18 : vector<16x1xf32> to vector<16x32xf32>
    %20 = arith.mulf %15, %19 : vector<16x32xf32>
    %21 = vector.broadcast %1 : vector<1x32xf32> to vector<16x32xf32>
    %22 = arith.mulf %20, %21 : vector<16x32xf32>
    %23 = vector.broadcast %2 : vector<1x32xf32> to vector<16x32xf32>
    %24 = arith.addf %22, %23 : vector<16x32xf32>
    %c0_9 = arith.constant 0 : index
    %c0_10 = arith.constant 0 : index
    %25 = vector.load %arg3[%c0_9, %c0_10] : memref<16x32xf32, #tpu.memory_space<vmem>>, vector<16x32xf32>
    tpu.vector_store %arg3[%c0_9, %c0_10], %24 {strides = array<i32>} : memref<16x32xf32, #tpu.memory_space<vmem>>, vector<16x32xf32>,
    return
  }
}

module attributes {stable_mosaic.version = 11 : i64} {
  func.func @_head_kernel(%arg0: memref<2x32xf32, #tpu.memory_space<vmem>>, %arg1: memref<32x32xbf16, #tpu.memory_space<vmem>>, %arg2: memref<1x32xf32, #tpu.memory_space<vmem>>, %arg3: memref<32x3xbf16, #tpu.memory_space<vmem>>, %arg4: memref<1x3xf32, #tpu.memory_space<vmem>>, %arg5: memref<2x3xf32, #tpu.memory_space<vmem>>) attributes {dimension_semantics = [], scalar_prefetch = 0 : i64, scratch_operands = 0 : i64, tpu.core_type = #tpu.core_type<tc>} {
    %c0 = arith.constant 0 : index
    %c0_0 = arith.constant 0 : index
    %0 = vector.load %arg0[%c0, %c0_0] : memref<2x32xf32, #tpu.memory_space<vmem>>, vector<2x32xf32>
    %1 = arith.truncf %0 : vector<2x32xf32> to vector<2x32xbf16>
    %c0_1 = arith.constant 0 : index
    %c0_2 = arith.constant 0 : index
    %2 = vector.load %arg1[%c0_1, %c0_2] : memref<32x32xbf16, #tpu.memory_space<vmem>>, vector<32x32xbf16>
    %cst = arith.constant dense<0.000000e+00> : vector<2x32xf32>
    %3 = tpu.matmul %1, %2, %cst {dimension_numbers = #tpu.dot_dimension_numbers<[1], [0], [0], [1], [0, 0, 1, 1], [], []>} : vector<2x32xbf16>, vector<32x32xbf16>, vector<2x32xf32> -> vector<2x32xf32>
    %c0_3 = arith.constant 0 : index
    %c0_4 = arith.constant 0 : index
    %4 = vector.load %arg2[%c0_3, %c0_4] : memref<1x32xf32, #tpu.memory_space<vmem>>, vector<1x32xf32>
    %5 = vector.broadcast %4 : vector<1x32xf32> to vector<2x32xf32>
    %6 = arith.addf %3, %5 : vector<2x32xf32>
    %7 = math.tanh %6 : vector<2x32xf32>
    %8 = arith.truncf %7 : vector<2x32xf32> to vector<2x32xbf16>
    %c0_5 = arith.constant 0 : index
    %c0_6 = arith.constant 0 : index
    %9 = vector.load %arg3[%c0_5, %c0_6] : memref<32x3xbf16, #tpu.memory_space<vmem>>, vector<32x3xbf16>
    %cst_7 = arith.constant dense<0.000000e+00> : vector<2x3xf32>
    %10 = tpu.matmul %8, %9, %cst_7 {dimension_numbers = #tpu.dot_dimension_numbers<[1], [0], [0], [1], [0, 0, 1, 1], [], []>} : vector<2x32xbf16>, vector<32x3xbf16>, vector<2x3xf32> -> vector<2x3xf32>
    %c0_8 = arith.constant 0 : index
    %c0_9 = arith.constant 0 : index
    %11 = vector.load %arg4[%c0_8, %c0_9] : memref<1x3xf32, #tpu.memory_space<vmem>>, vector<1x3xf32>
    %12 = vector.broadcast %11 : vector<1x3xf32> to vector<2x3xf32>
    %13 = arith.addf %10, %12 : vector<2x3xf32>
    %c0_10 = arith.constant 0 : index
    %c0_11 = arith.constant 0 : index
    %14 = vector.load %arg5[%c0_10, %c0_11] : memref<2x3xf32, #tpu.memory_space<vmem>>, vector<2x3xf32>
    tpu.vector_store %arg5[%c0_10, %c0_11], %13 {strides = array<i32>} : memref<2x3xf32, #tpu.memory_space<vmem>>, vector<2x3xf32>,
    return
  }
}

module attributes {stable_mosaic.version = 11 : i64} {
  func.func @_encoder_layer_kernel(%arg0: memref<16x32xf32, #tpu.memory_space<vmem>>, %arg1: memref<2x8xf32, #tpu.memory_space<vmem>>, %arg2: memref<32x96xbf16, #tpu.memory_space<vmem>>, %arg3: memref<1x96xf32, #tpu.memory_space<vmem>>, %arg4: memref<32x32xbf16, #tpu.memory_space<vmem>>, %arg5: memref<1x32xf32, #tpu.memory_space<vmem>>, %arg6: memref<1x32xf32, #tpu.memory_space<vmem>>, %arg7: memref<1x32xf32, #tpu.memory_space<vmem>>, %arg8: memref<32x64xbf16, #tpu.memory_space<vmem>>, %arg9: memref<1x64xf32, #tpu.memory_space<vmem>>, %arg10: memref<64x32xbf16, #tpu.memory_space<vmem>>, %arg11: memref<1x32xf32, #tpu.memory_space<vmem>>, %arg12: memref<1x32xf32, #tpu.memory_space<vmem>>, %arg13: memref<1x32xf32, #tpu.memory_space<vmem>>, %arg14: memref<16x32xf32, #tpu.memory_space<vmem>>) attributes {dimension_semantics = [], scalar_prefetch = 0 : i64, scratch_operands = 0 : i64, tpu.core_type = #tpu.core_type<tc>} {
    %c0 = arith.constant 0 : index
    %c0_0 = arith.constant 0 : index
    %0 = vector.load %arg0[%c0, %c0_0] : memref<16x32xf32, #tpu.memory_space<vmem>>, vector<16x32xf32>
    %c0_1 = arith.constant 0 : index
    %c0_2 = arith.constant 0 : index
    %1 = vector.load %arg1[%c0_1, %c0_2] : memref<2x8xf32, #tpu.memory_space<vmem>>, vector<2x8xf32>
    %2 = arith.truncf %0 : vector<16x32xf32> to vector<16x32xbf16>
    %c0_3 = arith.constant 0 : index
    %c0_4 = arith.constant 0 : index
    %3 = vector.load %arg2[%c0_3, %c0_4] : memref<32x96xbf16, #tpu.memory_space<vmem>>, vector<32x96xbf16>
    %cst = arith.constant dense<0.000000e+00> : vector<16x96xf32>
    %4 = tpu.matmul %2, %3, %cst {dimension_numbers = #tpu.dot_dimension_numbers<[1], [0], [0], [1], [0, 0, 1, 1], [], []>} : vector<16x32xbf16>, vector<32x96xbf16>, vector<16x96xf32> -> vector<16x96xf32>
    %c0_5 = arith.constant 0 : index
    %c0_6 = arith.constant 0 : index
    %5 = vector.load %arg3[%c0_5, %c0_6] : memref<1x96xf32, #tpu.memory_space<vmem>>, vector<1x96xf32>
    %6 = vector.broadcast %5 : vector<1x96xf32> to vector<16x96xf32>
    %7 = arith.addf %4, %6 : vector<16x96xf32>
    %8 = vector.extract_strided_slice %7 {offsets = [0, 0], sizes = [16, 32], strides = [1, 1]} : vector<16x96xf32> to vector<16x32xf32>
    %9 = vector.extract_strided_slice %7 {offsets = [0, 32], sizes = [16, 32], strides = [1, 1]} : vector<16x96xf32> to vector<16x32xf32>
    %10 = vector.extract_strided_slice %7 {offsets = [0, 64], sizes = [16, 32], strides = [1, 1]} : vector<16x96xf32> to vector<16x32xf32>
    %11 = vector.extract_strided_slice %1 {offsets = [0, 0], sizes = [1, 8], strides = [1, 1]} : vector<2x8xf32> to vector<1x8xf32>
    %12 = vector.extract_strided_slice %8 {offsets = [0, 0], sizes = [8, 16], strides = [1, 1]} : vector<16x32xf32> to vector<8x16xf32>
    %13 = arith.truncf %12 : vector<8x16xf32> to vector<8x16xbf16>
    %14 = vector.extract_strided_slice %9 {offsets = [0, 0], sizes = [8, 16], strides = [1, 1]} : vector<16x32xf32> to vector<8x16xf32>
    %15 = arith.truncf %14 : vector<8x16xf32> to vector<8x16xbf16>
    %16 = vector.extract_strided_slice %10 {offsets = [0, 0], sizes = [8, 16], strides = [1, 1]} : vector<16x32xf32> to vector<8x16xf32>
    %17 = arith.truncf %16 : vector<8x16xf32> to vector<8x16xbf16>
    %cst_7 = arith.constant dense<0.000000e+00> : vector<8x8xf32>
    %18 = tpu.matmul %13, %15, %cst_7 {dimension_numbers = #tpu.dot_dimension_numbers<[1], [1], [0], [0], [0, 0, 1, 0], [], []>} : vector<8x16xbf16>, vector<8x16xbf16>, vector<8x8xf32> -> vector<8x8xf32>
    %cst_8 = arith.constant 2.500000e-01 : f32
    %19 = vector.broadcast %cst_8 : f32 to vector<8x8xf32>
    %20 = arith.mulf %18, %19 : vector<8x8xf32>
    %21 = vector.broadcast %11 : vector<1x8xf32> to vector<8x8xf32>
    %22 = arith.addf %20, %21 : vector<8x8xf32>
    %cst_9 = arith.constant dense<0xFF800000> : vector<8xf32>
    %23 = vector.multi_reduction <maximumf>, %22, %cst_9 [1] : vector<8x8xf32> to vector<8xf32>
    %24 = vector.shape_cast %23 : vector<8xf32> to vector<8x1xf32>
    %25 = vector.broadcast %24 : vector<8x1xf32> to vector<8x8xf32>
    %26 = arith.subf %22, %25 : vector<8x8xf32>
    %27 = math.exp %26 : vector<8x8xf32>
    %cst_10 = arith.constant dense<0.000000e+00> : vector<8xf32>
    %28 = vector.multi_reduction <add>, %27, %cst_10 [1] : vector<8x8xf32> to vector<8xf32>
    %29 = vector.shape_cast %28 : vector<8xf32> to vector<8x1xf32>
    %30 = tpu.reciprocal %29 {approx = true} : vector<8x1xf32> -> vector<8x1xf32>
    %31 = vector.broadcast %30 : vector<8x1xf32> to vector<8x8xf32>
    %32 = arith.mulf %27, %31 : vector<8x8xf32>
    %33 = arith.truncf %32 : vector<8x8xf32> to vector<8x8xbf16>
    %cst_11 = arith.constant dense<0.000000e+00> : vector<8x16xf32>
    %34 = tpu.matmul %33, %17, %cst_11 {dimension_numbers = #tpu.dot_dimension_numbers<[1], [0], [0], [1], [0, 0, 1, 1], [], []>} : vector<8x8xbf16>, vector<8x16xbf16>, vector<8x16xf32> -> vector<8x16xf32>
    %35 = vector.extract_strided_slice %8 {offsets = [0, 16], sizes = [8, 16], strides = [1, 1]} : vector<16x32xf32> to vector<8x16xf32>
    %36 = arith.truncf %35 : vector<8x16xf32> to vector<8x16xbf16>
    %37 = vector.extract_strided_slice %9 {offsets = [0, 16], sizes = [8, 16], strides = [1, 1]} : vector<16x32xf32> to vector<8x16xf32>
    %38 = arith.truncf %37 : vector<8x16xf32> to vector<8x16xbf16>
    %39 = vector.extract_strided_slice %10 {offsets = [0, 16], sizes = [8, 16], strides = [1, 1]} : vector<16x32xf32> to vector<8x16xf32>
    %40 = arith.truncf %39 : vector<8x16xf32> to vector<8x16xbf16>
    %cst_12 = arith.constant dense<0.000000e+00> : vector<8x8xf32>
    %41 = tpu.matmul %36, %38, %cst_12 {dimension_numbers = #tpu.dot_dimension_numbers<[1], [1], [0], [0], [0, 0, 1, 0], [], []>} : vector<8x16xbf16>, vector<8x16xbf16>, vector<8x8xf32> -> vector<8x8xf32>
    %cst_13 = arith.constant 2.500000e-01 : f32
    %42 = vector.broadcast %cst_13 : f32 to vector<8x8xf32>
    %43 = arith.mulf %41, %42 : vector<8x8xf32>
    %44 = vector.broadcast %11 : vector<1x8xf32> to vector<8x8xf32>
    %45 = arith.addf %43, %44 : vector<8x8xf32>
    %cst_14 = arith.constant dense<0xFF800000> : vector<8xf32>
    %46 = vector.multi_reduction <maximumf>, %45, %cst_14 [1] : vector<8x8xf32> to vector<8xf32>
    %47 = vector.shape_cast %46 : vector<8xf32> to vector<8x1xf32>
    %48 = vector.broadcast %47 : vector<8x1xf32> to vector<8x8xf32>
    %49 = arith.subf %45, %48 : vector<8x8xf32>
    %50 = math.exp %49 : vector<8x8xf32>
    %cst_15 = arith.constant dense<0.000000e+00> : vector<8xf32>
    %51 = vector.multi_reduction <add>, %50, %cst_15 [1] : vector<8x8xf32> to vector<8xf32>
    %52 = vector.shape_cast %51 : vector<8xf32> to vector<8x1xf32>
    %53 = tpu.reciprocal %52 {approx = true} : vector<8x1xf32> -> vector<8x1xf32>
    %54 = vector.broadcast %53 : vector<8x1xf32> to vector<8x8xf32>
    %55 = arith.mulf %50, %54 : vector<8x8xf32>
    %56 = arith.truncf %55 : vector<8x8xf32> to vector<8x8xbf16>
    %cst_16 = arith.constant dense<0.000000e+00> : vector<8x16xf32>
    %57 = tpu.matmul %56, %40, %cst_16 {dimension_numbers = #tpu.dot_dimension_numbers<[1], [0], [0], [1], [0, 0, 1, 1], [], []>} : vector<8x8xbf16>, vector<8x16xbf16>, vector<8x16xf32> -> vector<8x16xf32>
    %58 = tpu.concatenate %34, %57 in 1 : vector<8x16xf32>, vector<8x16xf32> -> vector<8x32xf32>
    %59 = vector.extract_strided_slice %1 {offsets = [1, 0], sizes = [1, 8], strides = [1, 1]} : vector<2x8xf32> to vector<1x8xf32>
    %60 = vector.extract_strided_slice %8 {offsets = [8, 0], sizes = [8, 16], strides = [1, 1]} : vector<16x32xf32> to vector<8x16xf32>
    %61 = arith.truncf %60 : vector<8x16xf32> to vector<8x16xbf16>
    %62 = vector.extract_strided_slice %9 {offsets = [8, 0], sizes = [8, 16], strides = [1, 1]} : vector<16x32xf32> to vector<8x16xf32>
    %63 = arith.truncf %62 : vector<8x16xf32> to vector<8x16xbf16>
    %64 = vector.extract_strided_slice %10 {offsets = [8, 0], sizes = [8, 16], strides = [1, 1]} : vector<16x32xf32> to vector<8x16xf32>
    %65 = arith.truncf %64 : vector<8x16xf32> to vector<8x16xbf16>
    %cst_17 = arith.constant dense<0.000000e+00> : vector<8x8xf32>
    %66 = tpu.matmul %61, %63, %cst_17 {dimension_numbers = #tpu.dot_dimension_numbers<[1], [1], [0], [0], [0, 0, 1, 0], [], []>} : vector<8x16xbf16>, vector<8x16xbf16>, vector<8x8xf32> -> vector<8x8xf32>
    %cst_18 = arith.constant 2.500000e-01 : f32
    %67 = vector.broadcast %cst_18 : f32 to vector<8x8xf32>
    %68 = arith.mulf %66, %67 : vector<8x8xf32>
    %69 = vector.broadcast %59 : vector<1x8xf32> to vector<8x8xf32>
    %70 = arith.addf %68, %69 : vector<8x8xf32>
    %cst_19 = arith.constant dense<0xFF800000> : vector<8xf32>
    %71 = vector.multi_reduction <maximumf>, %70, %cst_19 [1] : vector<8x8xf32> to vector<8xf32>
    %72 = vector.shape_cast %71 : vector<8xf32> to vector<8x1xf32>
    %73 = vector.broadcast %72 : vector<8x1xf32> to vector<8x8xf32>
    %74 = arith.subf %70, %73 : vector<8x8xf32>
    %75 = math.exp %74 : vector<8x8xf32>
    %cst_20 = arith.constant dense<0.000000e+00> : vector<8xf32>
    %76 = vector.multi_reduction <add>, %75, %cst_20 [1] : vector<8x8xf32> to vector<8xf32>
    %77 = vector.shape_cast %76 : vector<8xf32> to vector<8x1xf32>
    %78 = tpu.reciprocal %77 {approx = true} : vector<8x1xf32> -> vector<8x1xf32>
    %79 = vector.broadcast %78 : vector<8x1xf32> to vector<8x8xf32>
    %80 = arith.mulf %75, %79 : vector<8x8xf32>
    %81 = arith.truncf %80 : vector<8x8xf32> to vector<8x8xbf16>
    %cst_21 = arith.constant dense<0.000000e+00> : vector<8x16xf32>
    %82 = tpu.matmul %81, %65, %cst_21 {dimension_numbers = #tpu.dot_dimension_numbers<[1], [0], [0], [1], [0, 0, 1, 1], [], []>} : vector<8x8xbf16>, vector<8x16xbf16>, vector<8x16xf32> -> vector<8x16xf32>
    %83 = vector.extract_strided_slice %8 {offsets = [8, 16], sizes = [8, 16], strides = [1, 1]} : vector<16x32xf32> to vector<8x16xf32>
    %84 = arith.truncf %83 : vector<8x16xf32> to vector<8x16xbf16>
    %85 = vector.extract_strided_slice %9 {offsets = [8, 16], sizes = [8, 16], strides = [1, 1]} : vector<16x32xf32> to vector<8x16xf32>
    %86 = arith.truncf %85 : vector<8x16xf32> to vector<8x16xbf16>
    %87 = vector.extract_strided_slice %10 {offsets = [8, 16], sizes = [8, 16], strides = [1, 1]} : vector<16x32xf32> to vector<8x16xf32>
    %88 = arith.truncf %87 : vector<8x16xf32> to vector<8x16xbf16>
    %cst_22 = arith.constant dense<0.000000e+00> : vector<8x8xf32>
    %89 = tpu.matmul %84, %86, %cst_22 {dimension_numbers = #tpu.dot_dimension_numbers<[1], [1], [0], [0], [0, 0, 1, 0], [], []>} : vector<8x16xbf16>, vector<8x16xbf16>, vector<8x8xf32> -> vector<8x8xf32>
    %cst_23 = arith.constant 2.500000e-01 : f32
    %90 = vector.broadcast %cst_23 : f32 to vector<8x8xf32>
    %91 = arith.mulf %89, %90 : vector<8x8xf32>
    %92 = vector.broadcast %59 : vector<1x8xf32> to vector<8x8xf32>
    %93 = arith.addf %91, %92 : vector<8x8xf32>
    %cst_24 = arith.constant dense<0xFF800000> : vector<8xf32>
    %94 = vector.multi_reduction <maximumf>, %93, %cst_24 [1] : vector<8x8xf32> to vector<8xf32>
    %95 = vector.shape_cast %94 : vector<8xf32> to vector<8x1xf32>
    %96 = vector.broadcast %95 : vector<8x1xf32> to vector<8x8xf32>
    %97 = arith.subf %93, %96 : vector<8x8xf32>
    %98 = math.exp %97 : vector<8x8xf32>
    %cst_25 = arith.constant dense<0.000000e+00> : vector<8xf32>
    %99 = vector.multi_reduction <add>, %98, %cst_25 [1] : vector<8x8xf32> to vector<8xf32>
    %100 = vector.shape_cast %99 : vector<8xf32> to vector<8x1xf32>
    %101 = tpu.reciprocal %100 {approx = true} : vector<8x1xf32> -> vector<8x1xf32>
    %102 = vector.broadcast %101 : vector<8x1xf32> to vector<8x8xf32>
    %103 = arith.mulf %98, %102 : vector<8x8xf32>
    %104 = arith.truncf %103 : vector<8x8xf32> to vector<8x8xbf16>
    %cst_26 = arith.constant dense<0.000000e+00> : vector<8x16xf32>
    %105 = tpu.matmul %104, %88, %cst_26 {dimension_numbers = #tpu.dot_dimension_numbers<[1], [0], [0], [1], [0, 0, 1, 1], [], []>} : vector<8x8xbf16>, vector<8x16xbf16>, vector<8x16xf32> -> vector<8x16xf32>
    %106 = tpu.concatenate %82, %105 in 1 : vector<8x16xf32>, vector<8x16xf32> -> vector<8x32xf32>
    %107 = tpu.concatenate %58, %106 in 0 : vector<8x32xf32>, vector<8x32xf32> -> vector<16x32xf32>
    %108 = arith.truncf %107 : vector<16x32xf32> to vector<16x32xbf16>
    %c0_27 = arith.constant 0 : index
    %c0_28 = arith.constant 0 : index
    %109 = vector.load %arg4[%c0_27, %c0_28] : memref<32x32xbf16, #tpu.memory_space<vmem>>, vector<32x32xbf16>
    %cst_29 = arith.constant dense<0.000000e+00> : vector<16x32xf32>
    %110 = tpu.matmul %108, %109, %cst_29 {dimension_numbers = #tpu.dot_dimension_numbers<[1], [0], [0], [1], [0, 0, 1, 1], [], []>} : vector<16x32xbf16>, vector<32x32xbf16>, vector<16x32xf32> -> vector<16x32xf32>
    %c0_30 = arith.constant 0 : index
    %c0_31 = arith.constant 0 : index
    %111 = vector.load %arg5[%c0_30, %c0_31] : memref<1x32xf32, #tpu.memory_space<vmem>>, vector<1x32xf32>
    %112 = vector.broadcast %111 : vector<1x32xf32> to vector<16x32xf32>
    %113 = arith.addf %110, %112 : vector<16x32xf32>
    %114 = arith.addf %0, %113 : vector<16x32xf32>
    %c0_32 = arith.constant 0 : index
    %c0_33 = arith.constant 0 : index
    %115 = vector.load %arg6[%c0_32, %c0_33] : memref<1x32xf32, #tpu.memory_space<vmem>>, vector<1x32xf32>
    %c0_34 = arith.constant 0 : index
    %c0_35 = arith.constant 0 : index
    %116 = vector.load %arg7[%c0_34, %c0_35] : memref<1x32xf32, #tpu.memory_space<vmem>>, vector<1x32xf32>
    %cst_36 = arith.constant dense<0.000000e+00> : vector<16xf32>
    %117 = vector.multi_reduction <add>, %114, %cst_36 [1] : vector<16x32xf32> to vector<16xf32>
    %118 = vector.shape_cast %117 : vector<16xf32> to vector<16x1xf32>
    %cst_37 = arith.constant 3.200000e+01 : f32
    %119 = vector.broadcast %cst_37 : f32 to vector<16x1xf32>
    %120 = arith.divf %118, %119 : vector<16x1xf32>
    %121 = vector.broadcast %120 : vector<16x1xf32> to vector<16x32xf32>
    %122 = arith.subf %114, %121 : vector<16x32xf32>
    %123 = arith.mulf %122, %122 : vector<16x32xf32>
    %cst_38 = arith.constant dense<0.000000e+00> : vector<16xf32>
    %124 = vector.multi_reduction <add>, %123, %cst_38 [1] : vector<16x32xf32> to vector<16xf32>
    %125 = vector.shape_cast %124 : vector<16xf32> to vector<16x1xf32>
    %cst_39 = arith.constant 3.200000e+01 : f32
    %126 = vector.broadcast %cst_39 : f32 to vector<16x1xf32>
    %127 = arith.divf %125, %126 : vector<16x1xf32>
    %128 = vector.broadcast %120 : vector<16x1xf32> to vector<16x32xf32>
    %129 = arith.subf %114, %128 : vector<16x32xf32>
    %cst_40 = arith.constant 9.99999974E-6 : f32
    %130 = vector.broadcast %cst_40 : f32 to vector<16x1xf32>
    %131 = arith.addf %127, %130 : vector<16x1xf32>
    %132 = math.rsqrt %131 : vector<16x1xf32>
    %133 = vector.broadcast %132 : vector<16x1xf32> to vector<16x32xf32>
    %134 = arith.mulf %129, %133 : vector<16x32xf32>
    %135 = vector.broadcast %115 : vector<1x32xf32> to vector<16x32xf32>
    %136 = arith.mulf %134, %135 : vector<16x32xf32>
    %137 = vector.broadcast %116 : vector<1x32xf32> to vector<16x32xf32>
    %138 = arith.addf %136, %137 : vector<16x32xf32>
    %139 = arith.truncf %138 : vector<16x32xf32> to vector<16x32xbf16>
    %c0_41 = arith.constant 0 : index
    %c0_42 = arith.constant 0 : index
    %140 = vector.load %arg8[%c0_41, %c0_42] : memref<32x64xbf16, #tpu.memory_space<vmem>>, vector<32x64xbf16>
    %cst_43 = arith.constant dense<0.000000e+00> : vector<16x64xf32>
    %141 = tpu.matmul %139, %140, %cst_43 {dimension_numbers = #tpu.dot_dimension_numbers<[1], [0], [0], [1], [0, 0, 1, 1], [], []>} : vector<16x32xbf16>, vector<32x64xbf16>, vector<16x64xf32> -> vector<16x64xf32>
    %c0_44 = arith.constant 0 : index
    %c0_45 = arith.constant 0 : index
    %142 = vector.load %arg9[%c0_44, %c0_45] : memref<1x64xf32, #tpu.memory_space<vmem>>, vector<1x64xf32>
    %143 = vector.broadcast %142 : vector<1x64xf32> to vector<16x64xf32>
    %144 = arith.addf %141, %143 : vector<16x64xf32>
    %cst_46 = arith.constant 5.000000e-01 : f32
    %145 = vector.broadcast %cst_46 : f32 to vector<16x64xf32>
    %146 = arith.mulf %145, %144 : vector<16x64xf32>
    %cst_47 = arith.constant 0.707106769 : f32
    %147 = vector.broadcast %cst_47 : f32 to vector<16x64xf32>
    %148 = arith.mulf %144, %147 : vector<16x64xf32>
    %149 = math.erf %148 : vector<16x64xf32>
    %cst_48 = arith.constant 1.000000e+00 : f32
    %150 = vector.broadcast %cst_48 : f32 to vector<16x64xf32>
    %151 = arith.addf %150, %149 : vector<16x64xf32>
    %152 = arith.mulf %146, %151 : vector<16x64xf32>
    %153 = arith.truncf %152 : vector<16x64xf32> to vector<16x64xbf16>
    %c0_49 = arith.constant 0 : index
    %c0_50 = arith.constant 0 : index
    %154 = vector.load %arg10[%c0_49, %c0_50] : memref<64x32xbf16, #tpu.memory_space<vmem>>, vector<64x32xbf16>
    %cst_51 = arith.constant dense<0.000000e+00> : vector<16x32xf32>
    %155 = tpu.matmul %153, %154, %cst_51 {dimension_numbers = #tpu.dot_dimension_numbers<[1], [0], [0], [1], [0, 0, 1, 1], [], []>} : vector<16x64xbf16>, vector<64x32xbf16>, vector<16x32xf32> -> vector<16x32xf32>
    %c0_52 = arith.constant 0 : index
    %c0_53 = arith.constant 0 : index
    %156 = vector.load %arg11[%c0_52, %c0_53] : memref<1x32xf32, #tpu.memory_space<vmem>>, vector<1x32xf32>
    %157 = vector.broadcast %156 : vector<1x32xf32> to vector<16x32xf32>
    %158 = arith.addf %155, %157 : vector<16x32xf32>
    %159 = arith.addf %138, %158 : vector<16x32xf32>
    %c0_54 = arith.constant 0 : index
    %c0_55 = arith.constant 0 : index
    %160 = vector.load %arg12[%c0_54, %c0_55] : memref<1x32xf32, #tpu.memory_space<vmem>>, vector<1x32xf32>
    %c0_56 = arith.constant 0 : index
    %c0_57 = arith.constant 0 : index
    %161 = vector.load %arg13[%c0_56, %c0_57] : memref<1x32xf32, #tpu.memory_space<vmem>>, vector<1x32xf32>
    %cst_58 = arith.constant dense<0.000000e+00> : vector<16xf32>
    %162 = vector.multi_reduction <add>, %159, %cst_58 [1] : vector<16x32xf32> to vector<16xf32>
    %163 = vector.shape_cast %162 : vector<16xf32> to vector<16x1xf32>
    %cst_59 = arith.constant 3.200000e+01 : f32
    %164 = vector.broadcast %cst_59 : f32 to vector<16x1xf32>
    %165 = arith.divf %163, %164 : vector<16x1xf32>
    %166 = vector.broadcast %165 : vector<16x1xf32> to vector<16x32xf32>
    %167 = arith.subf %159, %166 : vector<16x32xf32>
    %168 = arith.mulf %167, %167 : vector<16x32xf32>
    %cst_60 = arith.constant dense<0.000000e+00> : vector<16xf32>
    %169 = vector.multi_reduction <add>, %168, %cst_60 [1] : vector<16x32xf32> to vector<16xf32>
    %170 = vector.shape_cast %169 : vector<16xf32> to vector<16x1xf32>
    %cst_61 = arith.constant 3.200000e+01 : f32
    %171 = vector.broadcast %cst_61 : f32 to vector<16x1xf32>
    %172 = arith.divf %170, %171 : vector<16x1xf32>
    %173 = vector.broadcast %165 : vector<16x1xf32> to vector<16x32xf32>
    %174 = arith.subf %159, %173 : vector<16x32xf32>
    %cst_62 = arith.constant 9.99999974E-6 : f32
    %175 = vector.broadcast %cst_62 : f32 to vector<16x1xf32>
    %176 = arith.addf %172, %175 : vector<16x1xf32>
    %177 = math.rsqrt %176 : vector<16x1xf32>
    %178 = vector.broadcast %177 : vector<16x1xf32> to vector<16x32xf32>
    %179 = arith.mulf %174, %178 : vector<16x32xf32>
    %180 = vector.broadcast %160 : vector<1x32xf32> to vector<16x32xf32>
    %181 = arith.mulf %179, %180 : vector<16x32xf32>
    %182 = vector.broadcast %161 : vector<1x32xf32> to vector<16x32xf32>
    %183 = arith.addf %181, %182 : vector<16x32xf32>
    %c0_63 = arith.constant 0 : index
    %c0_64 = arith.constant 0 : index
    %184 = vector.load %arg14[%c0_63, %c0_64] : memref<16x32xf32, #tpu.memory_space<vmem>>, vector<16x32xf32>
    tpu.vector_store %arg14[%c0_63, %c0_64], %183 {strides = array<i32>} : memref<16x32xf32, #tpu.memory_space<vmem>>, vector<16x32xf32>,
    return
  }
}

</mosaic_0001>

<llo_original>
// kernel: roberta_classifier_forward.4
$region0: #{roberta_classifier_forward.4}
  #allocation0 [shape = 'u32[]', space=smem, size = 0x4, offset = 0x4, fixed_abs, tag = 'smem constant byte address 0x4 - core index']
  #allocation1 [shape = 'u32[72,128]{1,0:T(1,128)}', space=vmem, size = 0x9000, scoped, tag = 'internal scratch']
  %s0 = inlined_call_operand.vmem [shape: f32[16,32], index: 0, kind: input, shape index: {}]
  %s1 = inlined_call_operand.vmem [shape: f32[1,32], index: 1, kind: input, shape index: {}]
  %s2 = inlined_call_operand.vmem [shape: f32[1,32], index: 2, kind: input, shape index: {}]
  %s3 = inlined_call_operand.vmem [shape: f32[16,32], index: 3, kind: output, shape index: {}]
  %s4 = sld [smem:[#allocation0]]
  $region22: #{roberta_classifier_forward.4} parent=0
    _
  %s6 = ssub.s32 1, %s4
  %s7 = scalar_select 0, %s6, %s4
  // Predicated region
  $region2: #{roberta_classifier_forward.4} parent=0 // pred_check
    _
  $region3: #{roberta_classifier_forward.4} parent=0 // pred_check_branch
    %9 = sbr.rel (0) target = $region5
  $region4: #{roberta_classifier_forward.4} parent=0 // pred_region
    _
  $region5: #{roberta_classifier_forward.4} parent=0 // pred_fallthru
    _
  // Predicated region
  $region6: #{roberta_classifier_forward.4} parent=0 // pred_check
    _
  $region7: #{roberta_classifier_forward.4} parent=0 // pred_check_branch
    %11 = sbr.rel (0) target = $region9
  $region8: #{roberta_classifier_forward.4} parent=0 // pred_region
    _
  $region9: #{roberta_classifier_forward.4} parent=0 // pred_fallthru
    _
  // Predicated region
  $region10: #{roberta_classifier_forward.4} parent=0 // pred_check
    _
  $region11: #{roberta_classifier_forward.4} parent=0 // pred_check_branch
    %13 = sbr.rel (0) target = $region13
  $region12: #{roberta_classifier_forward.4} parent=0 // pred_region
    _
  $region13: #{roberta_classifier_forward.4} parent=0 // pred_fallthru
    _
  %v14 = vld [vmem:[%s0] sm:$0xff]
  %v15 = vld [vmem:[%s0 + $0x8] sm:$0xff]
  %v16 = vld [vmem:[%s1] sm:$0x1]
  %v17 = vld [vmem:[%s2] sm:$0x1]
  %vm18 = vcmask 261120
  %v19 = vsel %vm18, %v14, 0.0
  %20 = vadd.xlane.f32.xlu0 %v19
  %v21 = vpop.xlane.xlu0 %20
  %v22 = vsel %vm18, %v15, 0.0
  %23 = vadd.xlane.f32.xlu0 %v22
  %v24 = vpop.xlane.xlu0 %23
  %v25 = vrcp.pop 32.0
  %v26 = vmul.f32 32.0, %v25
  %v27 = vsub.f32 1.0, %v26
  %v28 = vmul.f32 %v25, %v27
  %v29 = vadd.f32 %v25, %v28
  %vm30 = vweird.f32 %v25
  %v31 = vsel %vm30, %v25, %v29
  %v32 = vmul.f32 %v21, %v31
  %v33 = vmul.f32 %v24, %v31
  %v34 = vsub.f32 %v14, %v32
  %v35 = vsub.f32 %v15, %v33
  %v36 = vmul.f32 %v34, %v34
  %v37 = vmul.f32 %v35, %v35
  %v38 = vsel %vm18, %v36, 0.0
  %39 = vadd.xlane.f32.xlu0 %v38
  %v40 = vpop.xlane.xlu0 %39
  %v41 = vsel %vm18, %v37, 0.0
  %42 = vadd.xlane.f32.xlu0 %v41
  %v43 = vpop.xlane.xlu0 %42
  %v44 = vmul.f32 %v40, %v31
  %v45 = vmul.f32 %v43, %v31
  %v46 = vadd.f32 %v44, 1e-05
  %v47 = vadd.f32 %v45, 1e-05
  %v48 = vrsqrt.pop %v46
  %v49 = vmul.f32 %v48, %v46
  %v50 = vmul.f32 %v49, %v48
  %v51 = vmul.f32 0.5, %v50
  %v52 = vsub.f32 1.5, %v51
  %v53 = vmul.f32 %v48, %v52
  %vm54 = vweird.f32 %v46
  %vm55 = vweird.f32 %v48
  %vm56 = vmor %vm54, %vm55
  %v57 = vsel %vm56, %v48, %v53
  %v58 = vrsqrt.pop %v47
  %v59 = vmul.f32 %v58, %v47
  %v60 = vmul.f32 %v59, %v58
  %v61 = vmul.f32 0.5, %v60
  %v62 = vsub.f32 1.5, %v61
  %v63 = vmul.f32 %v58, %v62
  %vm64 = vweird.f32 %v47
  %vm65 = vweird.f32 %v58
  %vm66 = vmor %vm64, %vm65
  %v67 = vsel %vm66, %v58, %v63
  %v68 = vmul.f32 %v34, %v57
  %v69 = vmul.f32 %v35, %v67
  %v71 = vperm.slane %v16, 0
  %v73 = vmul.f32 %v68, %v71
  %v74 = vmul.f32 %v69, %v71
  %v76 = vperm.slane %v17, 0
  %v78 = vadd.f32 %v73, %v76
  %v79 = vadd.f32 %v74, %v76
  %80 = vst.msk [vmem:[%s3] sm:$0xff] %vm18, %v78
  %81 = vst.msk [vmem:[%s3 + $0x8] sm:$0xff] %vm18, %v79
  // Predicated region
  $region14: #{roberta_classifier_forward.4} parent=0 // pred_check
    _
  $region15: #{roberta_classifier_forward.4} parent=0 // pred_check_branch
    %83 = sbr.rel (0) target = $region17
  $region16: #{roberta_classifier_forward.4} parent=0 // pred_region
    _
  $region17: #{roberta_classifier_forward.4} parent=0 // pred_fallthru
    _
  // Predicated region
  $region18: #{roberta_classifier_forward.4} parent=0 // pred_check
    _
  $region19: #{roberta_classifier_forward.4} parent=0 // pred_check_branch
    %85 = sbr.rel (0) target = $region21
  $region20: #{roberta_classifier_forward.4} parent=0 // pred_region
    _
  $region21: #{roberta_classifier_forward.4} parent=0 // pred_fallthru
    _

// kernel: roberta_classifier_forward.7
$region0: #{roberta_classifier_forward.7}
  #allocation0 [shape = 'u32[]', space=smem, size = 0x4, offset = 0x4, fixed_abs, tag = 'smem constant byte address 0x4 - core index']
  #allocation1 [shape = 'u32[72,128]{1,0:T(1,128)}', space=vmem, size = 0x9000, scoped, tag = 'internal scratch']
  %s0 = inlined_call_operand.vmem [shape: f32[2,32], index: 0, kind: input, shape index: {}]
  %s1 = inlined_call_operand.vmem [shape: bf16[32,32], index: 1, kind: input, shape index: {}]
  %s2 = inlined_call_operand.vmem [shape: f32[1,32], index: 2, kind: input, shape index: {}]
  %s3 = inlined_call_operand.vmem [shape: bf16[32,3], index: 3, kind: input, shape index: {}]
  %s4 = inlined_call_operand.vmem [shape: f32[1,3], index: 4, kind: input, shape index: {}]
  %s5 = inlined_call_operand.hbm [shape: f32[2,3], index: 5, kind: output, shape index: {}]
  %s6 = sld [smem:[#allocation0]]
  $region30: #{roberta_classifier_forward.7} parent=0
    _
  %s8 = ssub.s32 1, %s6
  %s9 = scalar_select 0, %s8, %s6
  $region1: #{roberta_classifier_forward.7} parent=0
    #allocation2 [shape = 'u8[1024]{0}', space=vmem, size = 0x400, scoped, tag = 'output window, operand 0, single buffered']
    #allocation3 [shape = 's32[1]{0}', space=sflag, size = 0x4, scoped, tag = 'scoped memory for roberta_classifier_forward.7']
    %10 = vsyncpa [#allocation3], 0
    // Predicated region
    $region2: #{roberta_classifier_forward.7} parent=1 // pred_check
      _
    $region3: #{roberta_classifier_forward.7} parent=1 // pred_check_branch
      %12 = sbr.rel (0) target = $region5
    $region4: #{roberta_classifier_forward.7} parent=1 // pred_region
      _
    $region5: #{roberta_classifier_forward.7} parent=1 // pred_fallthru
      _
    // Predicated region
    $region6: #{roberta_classifier_forward.7} parent=1 // pred_check
      _
    $region7: #{roberta_classifier_forward.7} parent=1 // pred_check_branch
      %14 = sbr.rel (0) target = $region9
    $region8: #{roberta_classifier_forward.7} parent=1 // pred_region
      _
    $region9: #{roberta_classifier_forward.7} parent=1 // pred_fallthru
      _
    // Predicated region
    $region10: #{roberta_classifier_forward.7} parent=1 // pred_check
      _
    $region11: #{roberta_classifier_forward.7} parent=1 // pred_check_branch
      %16 = sbr.rel (0) target = $region13
    $region12: #{roberta_classifier_forward.7} parent=1 // pred_region
      _
    $region13: #{roberta_classifier_forward.7} parent=1 // pred_fallthru
      _
    // Predicated region
    $region14: #{roberta_classifier_forward.7} parent=1 // pred_check
      _
    $region15: #{roberta_classifier_forward.7} parent=1 // pred_check_branch
      %18 = sbr.rel (0) target = $region17
    $region16: #{roberta_classifier_forward.7} parent=1 // pred_region
      _
    $region17: #{roberta_classifier_forward.7} parent=1 // pred_fallthru
      _
    // Predicated region
    $region18: #{roberta_classifier_forward.7} parent=1 // pred_check
      _
    $region19: #{roberta_classifier_forward.7} parent=1 // pred_check_branch
      %20 = sbr.rel (0) target = $region21
    $region20: #{roberta_classifier_forward.7} parent=1 // pred_region
      _
    $region21: #{roberta_classifier_forward.7} parent=1 // pred_fallthru
      _
    %v22 = vld [vmem:[%s0] sm:$0x3]
    %v23 = vpack.c.bf16 %v22, %v22
    %v24 = vld [vmem:[%s1] sm:$0xf]
    %v25 = vld [vmem:[%s1 + $0x4] sm:$0xf]
    %v26 = vld [vmem:[%s1 + $0x8] sm:$0xf]
    %v27 = vld [vmem:[%s1 + $0xc] sm:$0xf]
    %v28 = vld [vmem:[%s2] sm:$0x1]
    %v30 = vperm.slane %v28, 0
    %v36 = vunpack.c.l.b16 %v24
    %v37 = vunpack.c.l.b16 %v25
    %v38 = vunpack.c.l.b16 %v26
    %v39 = vunpack.c.l.b16 %v27
    %v40 = vpack.c.b16 %v37, %v36
    %v41 = vpack.c.b16 %v39, %v38
    %vm44 = vcmask 261120
    %v46 = vsel %vm44, %v23, 0
    %48 = vmatpush.bf16.msra.mxu0 0
    %49 = vmatpush.bf16.msra.mxu0 0
    %50 = vmatpush.bf16.msra.mxu0 0
    %51 = vmatpush.bf16.msra.mxu0 0
    %52 = vmatpush.bf16.msra.mxu0 0
    %53 = vmatpush.bf16.msra.mxu0 0
    %54 = vmatpush.bf16.msra.mxu0 %v41
    %55 = vmatpush.bf16.msra.mxu0 %v40
    %56 = vmatmul.bf16.gmra.mxu0 %v46
    %v57 = vpop.f32.mrf.mxu0
    %v58 = vadd.f32 %v30, %v57
    %v59 = vpop.f32.mrf.mxu0
    %60 = vdwg.mxu0
    %v61 = vtanh.pop %v58
    %v62 = vpack.c.bf16 %v61, %v61
    %v63 = vld [vmem:[%s3] sm:$0xf]
    %v64 = vld [vmem:[%s3 + $0x4] sm:$0xf]
    %v65 = vld [vmem:[%s3 + $0x8] sm:$0xf]
    %v66 = vld [vmem:[%s3 + $0xc] sm:$0xf]
    %v67 = vld [vmem:[%s4] sm:$0x1]
    %v69 = vperm.slane %v67, 0
    %v75 = vunpack.c.l.b16 %v63
    %v76 = vunpack.c.l.b16 %v64
    %v77 = vunpack.c.l.b16 %v65
    %v78 = vunpack.c.l.b16 %v66
    %v79 = vpack.c.b16 %v76, %v75
    %v80 = vpack.c.b16 %v78, %v77
    %v84 = vsel %vm44, %v62, 0
    %86 = vmatpush.bf16.msra.mxu0 0
    %87 = vmatpush.bf16.msra.mxu0 0
    %88 = vmatpush.bf16.msra.mxu0 0
    %89 = vmatpush.bf16.msra.mxu0 0
    %90 = vmatpush.bf16.msra.mxu0 0
    %91 = vmatpush.bf16.msra.mxu0 0
    %92 = vmatpush.bf16.msra.mxu0 %v80
    %93 = vmatpush.bf16.msra.mxu0 %v79
    %94 = vmatmul.bf16.gmra.mxu0 %v84
    %v95 = vpop.f32.mrf.mxu0
    %v96 = vadd.f32 %v69, %v95
    %v97 = vpop.f32.mrf.mxu0
    %98 = vdwg.mxu0
    %vm99 = vcmask 17408
    %100 = vst.msk [vmem:[#allocation2] sm:$0x3] %vm99, %v96
    // Predicated region
    $region22: #{roberta_classifier_forward.7} parent=1 // pred_check
      _
    $region23: #{roberta_classifier_forward.7} parent=1 // pred_check_branch
      %102 = sbr.rel (0) target = $region25
    $region24: #{roberta_classifier_forward.7} parent=1 // pred_region
      %104 = vsyncadd [#allocation3], 0
      %s106 = sshll.u32 [#allocation2], 4
      %s107 = int_to_ptr.vmem [resolvable:$true] %s106
      %s108 = sshll.u32 %s5, 4
      %s109 = int_to_ptr.hbm [resolvable:$true] %s108
      %111 = dma.vmem_to_hbm [thread:$0]  %s107, 32, %s109, [#allocation3]
    $region25: #{roberta_classifier_forward.7} parent=1 // pred_fallthru
      _
    // Predicated region
    $region26: #{roberta_classifier_forward.7} parent=1 // pred_check
      _
    $region27: #{roberta_classifier_forward.7} parent=1 // pred_check_branch
      %113 = sbr.rel (0) target = $region29
    $region28: #{roberta_classifier_forward.7} parent=1 // pred_region
      %115 = dma.done [#allocation3], 32
    $region29: #{roberta_classifier_forward.7} parent=1 // pred_fallthru
      _
    %116 = vsyncpa [#allocation3], 1

// kernel: roberta_classifier_forward.5
$region0: #{roberta_classifier_forward.5}
  #allocation0 [shape = 'u32[]', space=smem, size = 0x4, offset = 0x4, fixed_abs, tag = 'smem constant byte address 0x4 - core index']
  #allocation1 [shape = 'u32[72,128]{1,0:T(1,128)}', space=vmem, size = 0x9000, scoped, tag = 'internal scratch']
  %s0 = inlined_call_operand.vmem [shape: f32[16,32], index: 0, kind: input, shape index: {}]
  %s1 = inlined_call_operand.vmem [shape: f32[2,8], index: 1, kind: input, shape index: {}]
  %s2 = inlined_call_operand.vmem [shape: bf16[32,96], index: 2, kind: input, shape index: {}]
  %s3 = inlined_call_operand.vmem [shape: f32[1,96], index: 3, kind: input, shape index: {}]
  %s4 = inlined_call_operand.vmem [shape: bf16[32,32], index: 4, kind: input, shape index: {}]
  %s5 = inlined_call_operand.vmem [shape: f32[1,32], index: 5, kind: input, shape index: {}]
  %s6 = inlined_call_operand.vmem [shape: f32[1,32], index: 6, kind: input, shape index: {}]
  %s7 = inlined_call_operand.vmem [shape: f32[1,32], index: 7, kind: input, shape index: {}]
  %s8 = inlined_call_operand.vmem [shape: bf16[32,64], index: 8, kind: input, shape index: {}]
  %s9 = inlined_call_operand.vmem [shape: f32[1,64], index: 9, kind: input, shape index: {}]
  %s10 = inlined_call_operand.vmem [shape: bf16[64,32], index: 10, kind: input, shape index: {}]
  %s11 = inlined_call_operand.vmem [shape: f32[1,32], index: 11, kind: input, shape index: {}]
  %s12 = inlined_call_operand.vmem [shape: f32[1,32], index: 12, kind: input, shape index: {}]
  %s13 = inlined_call_operand.vmem [shape: f32[1,32], index: 13, kind: input, shape index: {}]
  %s14 = inlined_call_operand.vmem [shape: f32[16,32], index: 14, kind: output, shape index: {}]
  %s15 = sld [smem:[#allocation0]]
  $region66: #{roberta_classifier_forward.5} parent=0
    _
  %s17 = ssub.s32 1, %s15
  %s18 = scalar_select 0, %s17, %s15
  // Predicated region
  $region2: #{roberta_classifier_forward.5} parent=0 // pred_check
    _
  $region3: #{roberta_classifier_forward.5} parent=0 // pred_check_branch
    %20 = sbr.rel (0) target = $region5
  $region4: #{roberta_classifier_forward.5} parent=0 // pred_region
    _
  $region5: #{roberta_classifier_forward.5} parent=0 // pred_fallthru
    _
  // Predicated region
  $region6: #{roberta_classifier_forward.5} parent=0 // pred_check
    _
  $region7: #{roberta_classifier_forward.5} parent=0 // pred_check_branch
    %22 = sbr.rel (0) target = $region9
  $region8: #{roberta_classifier_forward.5} parent=0 // pred_region
    _
  $region9: #{roberta_classifier_forward.5} parent=0 // pred_fallthru
    _
  // Predicated region
  $region10: #{roberta_classifier_forward.5} parent=0 // pred_check
    _
  $region11: #{roberta_classifier_forward.5} parent=0 // pred_check_branch
    %24 = sbr.rel (0) target = $region13
  $region12: #{roberta_classifier_forward.5} parent=0 // pred_region
    _
  $region13: #{roberta_classifier_forward.5} parent=0 // pred_fallthru
    _
  // Predicated region
  $region14: #{roberta_classifier_forward.5} parent=0 // pred_check
    _
  $region15: #{roberta_classifier_forward.5} parent=0 // pred_check_branch
    %26 = sbr.rel (0) target = $region17
  $region16: #{roberta_classifier_forward.5} parent=0 // pred_region
    _
  $region17: #{roberta_classifier_forward.5} parent=0 // pred_fallthru
    _
  // Predicated region
  $region18: #{roberta_classifier_forward.5} parent=0 // pred_check
    _
  $region19: #{roberta_classifier_forward.5} parent=0 // pred_check_branch
    %28 = sbr.rel (0) target = $region21
  $region20: #{roberta_classifier_forward.5} parent=0 // pred_region
    _
  $region21: #{roberta_classifier_forward.5} parent=0 // pred_fallthru
    _
  // Predicated region
  $region22: #{roberta_classifier_forward.5} parent=0 // pred_check
    _
  $region23: #{roberta_classifier_forward.5} parent=0 // pred_check_branch
    %30 = sbr.rel (0) target = $region25
  $region24: #{roberta_classifier_forward.5} parent=0 // pred_region
    _
  $region25: #{roberta_classifier_forward.5} parent=0 // pred_fallthru
    _
  // Predicated region
  $region26: #{roberta_classifier_forward.5} parent=0 // pred_check
    _
  $region27: #{roberta_classifier_forward.5} parent=0 // pred_check_branch
    %32 = sbr.rel (0) target = $region29
  $region28: #{roberta_classifier_forward.5} parent=0 // pred_region
    _
  $region29: #{roberta_classifier_forward.5} parent=0 // pred_fallthru
    _
  // Predicated region
  $region30: #{roberta_classifier_forward.5} parent=0 // pred_check
    _
  $region31: #{roberta_classifier_forward.5} parent=0 // pred_check_branch
    %34 = sbr.rel (0) target = $region33
  $region32: #{roberta_classifier_forward.5} parent=0 // pred_region
    _
  $region33: #{roberta_classifier_forward.5} parent=0 // pred_fallthru
    _
  // Predicated region
  $region34: #{roberta_classifier_forward.5} parent=0 // pred_check
    _
  $region35: #{roberta_classifier_forward.5} parent=0 // pred_check_branch
    %36 = sbr.rel (0) target = $region37
  $region36: #{roberta_classifier_forward.5} parent=0 // pred_region
    _
  $region37: #{roberta_classifier_forward.5} parent=0 // pred_fallthru
    _
  // Predicated region
  $region38: #{roberta_classifier_forward.5} parent=0 // pred_check
    _
  $region39: #{roberta_classifier_forward.5} parent=0 // pred_check_branch
    %38 = sbr.rel (0) target = $region41
  $region40: #{roberta_classifier_forward.5} parent=0 // pred_region
    _
  $region41: #{roberta_classifier_forward.5} parent=0 // pred_fallthru
    _
  // Predicated region
  $region42: #{roberta_classifier_forward.5} parent=0 // pred_check
    _
  $region43: #{roberta_classifier_forward.5} parent=0 // pred_check_branch
    %40 = sbr.rel (0) target = $region45
  $region44: #{roberta_classifier_forward.5} parent=0 // pred_region
    _
  $region45: #{roberta_classifier_forward.5} parent=0 // pred_fallthru
    _
  // Predicated region
  $region46: #{roberta_classifier_forward.5} parent=0 // pred_check
    _
  $region47: #{roberta_classifier_forward.5} parent=0 // pred_check_branch
    %42 = sbr.rel (0) target = $region49
  $region48: #{roberta_classifier_forward.5} parent=0 // pred_region
    _
  $region49: #{roberta_classifier_forward.5} parent=0 // pred_fallthru
    _
  // Predicated region
  $region50: #{roberta_classifier_forward.5} parent=0 // pred_check
    _
  $region51: #{roberta_classifier_forward.5} parent=0 // pred_check_branch
    %44 = sbr.rel (0) target = $region53
  $region52: #{roberta_classifier_forward.5} parent=0 // pred_region
    _
  $region53: #{roberta_classifier_forward.5} parent=0 // pred_fallthru
    _
  // Predicated region
  $region54: #{roberta_classifier_forward.5} parent=0 // pred_check
    _
  $region55: #{roberta_classifier_forward.5} parent=0 // pred_check_branch
    %46 = sbr.rel (0) target = $region57
  $region56: #{roberta_classifier_forward.5} parent=0 // pred_region
    _
  $region57: #{roberta_classifier_forward.5} parent=0 // pred_fallthru
    _
  %v48 = vld [vmem:[%s0] sm:$0xff]
  %v49 = vld [vmem:[%s0 + $0x8] sm:$0xff]
  %v50 = vld [vmem:[%s1] sm:$0x3]
  %v51 = vpack.c.bf16 %v49, %v48
  %v52 = vld [vmem:[%s2] sm:$0xf]
  %v53 = vld [vmem:[%s2 + $0x4] sm:$0xf]
  %v54 = vld [vmem:[%s2 + $0x8] sm:$0xf]
  %v55 = vld [vmem:[%s2 + $0xc] sm:$0xf]
  %v56 = vld [vmem:[%s3] sm:$0x1]
  %v58 = vperm.slane %v56, 0
  %v64 = vunpack.c.l.b16 %v52
  %v65 = vunpack.c.l.b16 %v53
  %v66 = vunpack.c.l.b16 %v54
  %v67 = vunpack.c.l.b16 %v55
  %v68 = vpack.c.b16 %v65, %v64
  %v69 = vpack.c.b16 %v67, %v66
  %vm72 = vcmask 261120
  %v74 = vsel %vm72, %v51, 0
  %76 = vmatpush.bf16.msra.mxu0 0
  %77 = vmatpush.bf16.msra.mxu0 0
  %78 = vmatpush.bf16.msra.mxu0 0
  %79 = vmatpush.bf16.msra.mxu0 0
  %80 = vmatpush.bf16.msra.mxu0 0
  %81 = vmatpush.bf16.msra.mxu0 0
  %82 = vmatpush.bf16.msra.mxu0 %v69
  %83 = vmatpush.bf16.msra.mxu0 %v68
  %84 = vmatmul.bf16.gmra.mxu0 %v74
  %v85 = vpop.f32.mrf.mxu0
  %v86 = vadd.f32 %v58, %v85
  %v87 = vpop.f32.mrf.mxu0
  %v88 = vadd.f32 %v58, %v87
  %89 = vdwg.mxu0
  %v90 = vpack.c.bf16 %v86, %v86
  %92 = vrot.lane.b32.xlu0 %v90, 96
  %v93 = vpop.permute.xlu0 %92
  %vm94 = vcmask 130048
  %v96 = vsel %vm94, %v90, 0
  %v99 = vsel %vm94, %v93, 0
  %101 = vmatpush.bf16.xpose.msra.mxu0 0
  %102 = vmatpush.bf16.xpose.msra.mxu0 0
  %103 = vmatpush.bf16.xpose.msra.mxu0 0
  %104 = vmatpush.bf16.xpose.msra.mxu0 0
  %105 = vmatpush.bf16.xpose.msra.mxu0 0
  %106 = vmatpush.bf16.xpose.msra.mxu0 0
  %107 = vmatpush.bf16.xpose.msra.mxu0 0
  %108 = vmatpush.bf16.xpose.msra.mxu0 %v99
  %109 = vmatmul.bf16.gmra.mxu0 %v96
  %v110 = vpop.f32.mrf.mxu0
  %v111 = vadd.f32 0.0, %v110
  %v112 = vpop.f32.mrf.mxu0
  %113 = vdwg.mxu0
  %v114 = vmul.f32 %v111, 0.25
  %v115 = vperm.slane %v50, 0
  %v116 = vadd.f32 %v114, %v115
  %vm117 = vcmask 64512
  %v118 = vsel %vm117, %v116, -inf
  %119 = vmax.xlane.f32.xlu0 %v118
  %v120 = vpop.xlane.xlu0 %119
  %v121 = vsub.f32 %v116, %v120
  %v122 = vmul.f32 %v121, 1.442695
  %v123 = vpow.pop %v122
  %v124 = vsel %vm117, %v123, 0.0
  %125 = vadd.xlane.f32.xlu0 %v124
  %v126 = vpop.xlane.xlu0 %125
  %v127 = vrcp.pop %v126
  %v128 = vmul.f32 %v123, %v127
  %v129 = vpack.c.bf16 %v128, %v128
  %130 = vrot.lane.b32.xlu0 %v90, 64
  %v131 = vpop.permute.xlu0 %130
  %v133 = vsel %vm117, %v129, 0
  %vm135 = vcmask 1043456
  %v137 = vsel %vm135, %v131, 0
  %139 = vmatpush.bf16.msra.mxu0 0
  %140 = vmatpush.bf16.msra.mxu0 0
  %141 = vmatpush.bf16.msra.mxu0 0
  %142 = vmatpush.bf16.msra.mxu0 0
  %143 = vmatpush.bf16.msra.mxu0 0
  %144 = vmatpush.bf16.msra.mxu0 0
  %145 = vmatpush.bf16.msra.mxu0 0
  %146 = vmatpush.bf16.msra.mxu0 %v137
  %147 = vmatmul.bf16.gmra.mxu0 %v133
  %v148 = vpop.f32.mrf.mxu0
  %v149 = vadd.f32 0.0, %v148
  %v150 = vpop.f32.mrf.mxu0
  %151 = vdwg.mxu0
  %152 = vrot.lane.b32.xlu0 %v90, 112
  %v153 = vpop.permute.xlu0 %152
  %154 = vrot.lane.b32.xlu0 %v90, 80
  %v155 = vpop.permute.xlu0 %154
  %v157 = vsel %vm94, %v153, 0
  %v160 = vsel %vm94, %v155, 0
  %162 = vmatpush.bf16.xpose.msra.mxu0 0
  %163 = vmatpush.bf16.xpose.msra.mxu0 0
  %164 = vmatpush.bf16.xpose.msra.mxu0 0
  %165 = vmatpush.bf16.xpose.msra.mxu0 0
  %166 = vmatpush.bf16.xpose.msra.mxu0 0
  %167 = vmatpush.bf16.xpose.msra.mxu0 0
  %168 = vmatpush.bf16.xpose.msra.mxu0 0
  %169 = vmatpush.bf16.xpose.msra.mxu0 %v160
  %170 = vmatmul.bf16.gmra.mxu0 %v157
  %v171 = vpop.f32.mrf.mxu0
  %v172 = vadd.f32 0.0, %v171
  %v173 = vpop.f32.mrf.mxu0
  %174 = vdwg.mxu0
  %v175 = vmul.f32 %v172, 0.25
  %v176 = vadd.f32 %v175, %v115
  %v177 = vsel %vm117, %v176, -inf
  %178 = vmax.xlane.f32.xlu0 %v177
  %v179 = vpop.xlane.xlu0 %178
  %v180 = vsub.f32 %v176, %v179
  %v181 = vmul.f32 %v180, 1.442695
  %v182 = vpow.pop %v181
  %v183 = vsel %vm117, %v182, 0.0
  %184 = vadd.xlane.f32.xlu0 %v183
  %v185 = vpop.xlane.xlu0 %184
  %v186 = vrcp.pop %v185
  %v187 = vmul.f32 %v182, %v186
  %v188 = vpack.c.bf16 %v187, %v187
  %189 = vrot.lane.b32.xlu0 %v90, 48
  %v190 = vpop.permute.xlu0 %189
  %v192 = vsel %vm117, %v188, 0
  %v195 = vsel %vm135, %v190, 0
  %197 = vmatpush.bf16.msra.mxu0 0
  %198 = vmatpush.bf16.msra.mxu0 0
  %199 = vmatpush.bf16.msra.mxu0 0
  %200 = vmatpush.bf16.msra.mxu0 0
  %201 = vmatpush.bf16.msra.mxu0 0
  %202 = vmatpush.bf16.msra.mxu0 0
  %203 = vmatpush.bf16.msra.mxu0 0
  %204 = vmatpush.bf16.msra.mxu0 %v195
  %205 = vmatmul.bf16.gmra.mxu0 %v192
  %v206 = vpop.f32.mrf.mxu0
  %v207 = vadd.f32 0.0, %v206
  %v208 = vpop.f32.mrf.mxu0
  %209 = vdwg.mxu0
  %211 = vrot.lane.b32.xlu0 %v207, 16
  %v212 = vpop.permute.xlu0 %211
  %v214 = vsel %vm94, %v149, %v212
  %v215 = vpack.c.bf16 %v88, %v88
  %217 = vrot.lane.b32.xlu0 %v215, 96
  %v218 = vpop.permute.xlu0 %217
  %v220 = vsel %vm94, %v215, 0
  %v223 = vsel %vm94, %v218, 0
  %225 = vmatpush.bf16.xpose.msra.mxu0 0
  %226 = vmatpush.bf16.xpose.msra.mxu0 0
  %227 = vmatpush.bf16.xpose.msra.mxu0 0
  %228 = vmatpush.bf16.xpose.msra.mxu0 0
  %229 = vmatpush.bf16.xpose.msra.mxu0 0
  %230 = vmatpush.bf16.xpose.msra.mxu0 0
  %231 = vmatpush.bf16.xpose.msra.mxu0 0
  %232 = vmatpush.bf16.xpose.msra.mxu0 %v223
  %233 = vmatmul.bf16.gmra.mxu0 %v220
  %v234 = vpop.f32.mrf.mxu0
  %v235 = vadd.f32 0.0, %v234
  %v236 = vpop.f32.mrf.mxu0
  %237 = vdwg.mxu0
  %v238 = vmul.f32 %v235, 0.25
  %v239 = vperm.slane %v50, 1
  %v240 = vadd.f32 %v238, %v239
  %v241 = vsel %vm117, %v240, -inf
  %242 = vmax.xlane.f32.xlu0 %v241
  %v243 = vpop.xlane.xlu0 %242
  %v244 = vsub.f32 %v240, %v243
  %v245 = vmul.f32 %v244, 1.442695
  %v246 = vpow.pop %v245
  %v247 = vsel %vm117, %v246, 0.0
  %248 = vadd.xlane.f32.xlu0 %v247
  %v249 = vpop.xlane.xlu0 %248
  %v250 = vrcp.pop %v249
  %v251 = vmul.f32 %v246, %v250
  %v252 = vpack.c.bf16 %v251, %v251
  %253 = vrot.lane.b32.xlu0 %v215, 64
  %v254 = vpop.permute.xlu0 %253
  %v256 = vsel %vm117, %v252, 0
  %v259 = vsel %vm135, %v254, 0
  %261 = vmatpush.bf16.msra.mxu0 0
  %262 = vmatpush.bf16.msra.mxu0 0
  %263 = vmatpush.bf16.msra.mxu0 0
  %264 = vmatpush.bf16.msra.mxu0 0
  %265 = vmatpush.bf16.msra.mxu0 0
  %266 = vmatpush.bf16.msra.mxu0 0
  %267 = vmatpush.bf16.msra.mxu0 0
  %268 = vmatpush.bf16.msra.mxu0 %v259
  %269 = vmatmul.bf16.gmra.mxu0 %v256
  %v270 = vpop.f32.mrf.mxu0
  %v271 = vadd.f32 0.0, %v270
  %v272 = vpop.f32.mrf.mxu0
  %273 = vdwg.mxu0
  %274 = vrot.lane.b32.xlu0 %v215, 112
  %v275 = vpop.permute.xlu0 %274
  %276 = vrot.lane.b32.xlu0 %v215, 80
  %v277 = vpop.permute.xlu0 %276
  %v279 = vsel %vm94, %v275, 0
  %v282 = vsel %vm94, %v277, 0
  %284 = vmatpush.bf16.xpose.msra.mxu0 0
  %285 = vmatpush.bf16.xpose.msra.mxu0 0
  %286 = vmatpush.bf16.xpose.msra.mxu0 0
  %287 = vmatpush.bf16.xpose.msra.mxu0 0
  %288 = vmatpush.bf16.xpose.msra.mxu0 0
  %289 = vmatpush.bf16.xpose.msra.mxu0 0
  %290 = vmatpush.bf16.xpose.msra.mxu0 0
  %291 = vmatpush.bf16.xpose.msra.mxu0 %v282
  %292 = vmatmul.bf16.gmra.mxu0 %v279
  %v293 = vpop.f32.mrf.mxu0
  %v294 = vadd.f32 0.0, %v293
  %v295 = vpop.f32.mrf.mxu0
  %296 = vdwg.mxu0
  %v297 = vmul.f32 %v294, 0.25
  %v298 = vadd.f32 %v297, %v239
  %v299 = vsel %vm117, %v298, -inf
  %300 = vmax.xlane.f32.xlu0 %v299
  %v301 = vpop.xlane.xlu0 %300
  %v302 = vsub.f32 %v298, %v301
  %v303 = vmul.f32 %v302, 1.442695
  %v304 = vpow.pop %v303
  %v305 = vsel %vm117, %v304, 0.0
  %306 = vadd.xlane.f32.xlu0 %v305
  %v307 = vpop.xlane.xlu0 %306
  %v308 = vrcp.pop %v307
  %v309 = vmul.f32 %v304, %v308
  %v310 = vpack.c.bf16 %v309, %v309
  %311 = vrot.lane.b32.xlu0 %v215, 48
  %v312 = vpop.permute.xlu0 %311
  %v314 = vsel %vm117, %v310, 0
  %v317 = vsel %vm135, %v312, 0
  %319 = vmatpush.bf16.msra.mxu0 0
  %320 = vmatpush.bf16.msra.mxu0 0
  %321 = vmatpush.bf16.msra.mxu0 0
  %322 = vmatpush.bf16.msra.mxu0 0
  %323 = vmatpush.bf16.msra.mxu0 0
  %324 = vmatpush.bf16.msra.mxu0 0
  %325 = vmatpush.bf16.msra.mxu0 0
  %326 = vmatpush.bf16.msra.mxu0 %v317
  %327 = vmatmul.bf16.gmra.mxu0 %v314
  %v328 = vpop.f32.mrf.mxu0
  %v329 = vadd.f32 0.0, %v328
  %v330 = vpop.f32.mrf.mxu0
  %331 = vdwg.mxu0
  %333 = vrot.lane.b32.xlu0 %v329, 16
  %v334 = vpop.permute.xlu0 %333
  %v336 = vsel %vm94, %v271, %v334
  %v337 = vpack.c.bf16 %v336, %v214
  %v338 = vld [vmem:[%s4] sm:$0xf]
  %v339 = vld [vmem:[%s4 + $0x4] sm:$0xf]
  %v340 = vld [vmem:[%s4 + $0x8] sm:$0xf]
  %v341 = vld [vmem:[%s4 + $0xc] sm:$0xf]
  %v342 = vld [vmem:[%s5] sm:$0x1]
  %v344 = vperm.slane %v342, 0
  %v350 = vunpack.c.l.b16 %v338
  %v351 = vunpack.c.l.b16 %v339
  %v352 = vunpack.c.l.b16 %v340
  %v353 = vunpack.c.l.b16 %v341
  %v354 = vpack.c.b16 %v351, %v350
  %v355 = vpack.c.b16 %v353, %v352
  %v359 = vsel %vm72, %v337, 0
  %361 = vmatpush.bf16.msra.mxu0 0
  %362 = vmatpush.bf16.msra.mxu0 0
  %363 = vmatpush.bf16.msra.mxu0 0
  %364 = vmatpush.bf16.msra.mxu0 0
  %365 = vmatpush.bf16.msra.mxu0 0
  %366 = vmatpush.bf16.msra.mxu0 0
  %367 = vmatpush.bf16.msra.mxu0 %v355
  %368 = vmatpush.bf16.msra.mxu0 %v354
  %369 = vmatmul.bf16.gmra.mxu0 %v359
  %v370 = vpop.f32.mrf.mxu0
  %v371 = vadd.f32 %v344, %v370
  %v372 = vpop.f32.mrf.mxu0
  %v373 = vadd.f32 %v344, %v372
  %374 = vdwg.mxu0
  %v375 = vadd.f32 %v48, %v371
  %v376 = vadd.f32 %v49, %v373
  %v377 = vld [vmem:[%s6] sm:$0x1]
  %v378 = vld [vmem:[%s7] sm:$0x1]
  %v379 = vsel %vm72, %v375, 0.0
  %380 = vadd.xlane.f32.xlu0 %v379
  %v381 = vpop.xlane.xlu0 %380
  %v382 = vsel %vm72, %v376, 0.0
  %383 = vadd.xlane.f32.xlu0 %v382
  %v384 = vpop.xlane.xlu0 %383
  %v385 = vrcp.pop 32.0
  %v386 = vmul.f32 32.0, %v385
  %v387 = vsub.f32 1.0, %v386
  %v388 = vmul.f32 %v385, %v387
  %v389 = vadd.f32 %v385, %v388
  %vm390 = vweird.f32 %v385
  %v391 = vsel %vm390, %v385, %v389
  %v392 = vmul.f32 %v381, %v391
  %v393 = vmul.f32 %v384, %v391
  %v394 = vsub.f32 %v375, %v392
  %v395 = vsub.f32 %v376, %v393
  %v396 = vmul.f32 %v394, %v394
  %v397 = vmul.f32 %v395, %v395
  %v398 = vsel %vm72, %v396, 0.0
  %399 = vadd.xlane.f32.xlu0 %v398
  %v400 = vpop.xlane.xlu0 %399
  %v401 = vsel %vm72, %v397, 0.0
  %402 = vadd.xlane.f32.xlu0 %v401
  %v403 = vpop.xlane.xlu0 %402
  %v404 = vmul.f32 %v400, %v391
  %v405 = vmul.f32 %v403, %v391
  %v406 = vadd.f32 %v404, 1e-05
  %v407 = vadd.f32 %v405, 1e-05
  %v408 = vrsqrt.pop %v406
  %v409 = vmul.f32 %v408, %v406
  %v410 = vmul.f32 %v409, %v408
  %v411 = vmul.f32 0.5, %v410
  %v412 = vsub.f32 1.5, %v411
  %v413 = vmul.f32 %v408, %v412
  %vm414 = vweird.f32 %v406
  %vm415 = vweird.f32 %v408
  %vm416 = vmor %vm414, %vm415
  %v417 = vsel %vm416, %v408, %v413
  %v418 = vrsqrt.pop %v407
  %v419 = vmul.f32 %v418, %v407
  %v420 = vmul.f32 %v419, %v418
  %v421 = vmul.f32 0.5, %v420
  %v422 = vsub.f32 1.5, %v421
  %v423 = vmul.f32 %v418, %v422
  %vm424 = vweird.f32 %v407
  %vm425 = vweird.f32 %v418
  %vm426 = vmor %vm424, %vm425
  %v427 = vsel %vm426, %v418, %v423
  %v428 = vmul.f32 %v394, %v417
  %v429 = vmul.f32 %v395, %v427
  %v431 = vperm.slane %v377, 0
  %v433 = vmul.f32 %v428, %v431
  %v434 = vmul.f32 %v429, %v431
  %v436 = vperm.slane %v378, 0
  %v438 = vadd.f32 %v433, %v436
  %v439 = vadd.f32 %v434, %v436
  %v440 = vpack.c.bf16 %v439, %v438
  %v441 = vld [vmem:[%s8] sm:$0xf]
  %v442 = vld [vmem:[%s8 + $0x4] sm:$0xf]
  %v443 = vld [vmem:[%s8 + $0x8] sm:$0xf]
  %v444 = vld [vmem:[%s8 + $0xc] sm:$0xf]
  %v445 = vld [vmem:[%s9] sm:$0x1]
  %v447 = vperm.slane %v445, 0
  %v453 = vunpack.c.l.b16 %v441
  %v454 = vunpack.c.l.b16 %v442
  %v455 = vunpack.c.l.b16 %v443
  %v456 = vunpack.c.l.b16 %v444
  %v457 = vpack.c.b16 %v454, %v453
  %v458 = vpack.c.b16 %v456, %v455
  %v462 = vsel %vm72, %v440, 0
  %464 = vmatpush.bf16.msra.mxu0 0
  %465 = vmatpush.bf16.msra.mxu0 0
  %466 = vmatpush.bf16.msra.mxu0 0
  %467 = vmatpush.bf16.msra.mxu0 0
  %468 = vmatpush.bf16.msra.mxu0 0
  %469 = vmatpush.bf16.msra.mxu0 0
  %470 = vmatpush.bf16.msra.mxu0 %v458
  %471 = vmatpush.bf16.msra.mxu0 %v457
  %472 = vmatmul.bf16.gmra.mxu0 %v462
  %v473 = vpop.f32.mrf.mxu0
  %v474 = vadd.f32 %v447, %v473
  %v475 = vpop.f32.mrf.mxu0
  %v476 = vadd.f32 %v447, %v475
  %477 = vdwg.mxu0
  %v478 = vmul.f32 %v474, 0.5
  %v479 = vmul.f32 %v476, 0.5
  %v480 = vmul.f32 %v474, 0.70710677
  %v481 = vmul.f32 %v476, 0.70710677
  %v482 = vmul.f32 %v480, %v480
  %v483 = vmin.f32 16.0, %v482
  %v484 = vmul.f32 %v483, 2.1237322e-06
  %v485 = vadd.f32 %v484, 0.00028619796
  %v486 = vmul.f32 %v483, %v485
  %v487 = vadd.f32 %v486, 0.0036580483
  %v488 = vmul.f32 %v483, %v487
  %v489 = vadd.f32 %v488, 0.05243302
  %v490 = vmul.f32 %v483, %v489
  %v491 = vadd.f32 %v490, 0.18741608
  %v492 = vmul.f32 %v483, %v491
  %v493 = vadd.f32 %v492, 1.1283791
  %v494 = vmul.f32 %v480, %v493
  %v495 = vmul.f32 %v483, 3.8918573e-05
  %v496 = vadd.f32 %v495, 0.001143296
  %v497 = vmul.f32 %v483, %v496
  %v498 = vadd.f32 %v497, 0.014752088
  %v499 = vmul.f32 %v483, %v498
  %v500 = vadd.f32 %v499, 0.112945676
  %v501 = vmul.f32 %v483, %v500
  %v502 = vadd.f32 %v501, 0.4994258
  %v503 = vmul.f32 %v483, %v502
  %v504 = vadd.f32 %v503, 1.0
  %v505 = vrcp.pop %v504
  %v506 = vmul.f32 %v504, %v505
  %v507 = vsub.f32 1.0, %v506
  %v508 = vmul.f32 %v505, %v507
  %v509 = vadd.f32 %v505, %v508
  %vm510 = vweird.f32 %v504
  %vm511 = vweird.f32 %v505
  %vm512 = vmor %vm510, %vm511
  %v513 = vsel %vm512, %v505, %v509
  %v514 = vand.u32 2147483647, %v504
  %vm515 = vcmp.eq.f32.partialorder %v514, 8.507059e+37
  %v516 = vand.u32 %v504, 2147483648
  %v517 = vor.u32 1.1754944e-38, %v516
  %v518 = vsel %vm515, %v517, %v513
  %v519 = vmul.f32 %v494, %v518
  %v520 = vmin.f32 %v519, 1.0
  %v521 = vmax.f32 %v520, -1.0
  %v522 = vmul.f32 %v481, %v481
  %v523 = vmin.f32 16.0, %v522
  %v524 = vmul.f32 %v523, 2.1237322e-06
  %v525 = vadd.f32 %v524, 0.00028619796
  %v526 = vmul.f32 %v523, %v525
  %v527 = vadd.f32 %v526, 0.0036580483
  %v528 = vmul.f32 %v523, %v527
  %v529 = vadd.f32 %v528, 0.05243302
  %v530 = vmul.f32 %v523, %v529
  %v531 = vadd.f32 %v530, 0.18741608
  %v532 = vmul.f32 %v523, %v531
  %v533 = vadd.f32 %v532, 1.1283791
  %v534 = vmul.f32 %v481, %v533
  %v535 = vmul.f32 %v523, 3.8918573e-05
  %v536 = vadd.f32 %v535, 0.001143296
  %v537 = vmul.f32 %v523, %v536
  %v538 = vadd.f32 %v537, 0.014752088
  %v539 = vmul.f32 %v523, %v538
  %v540 = vadd.f32 %v539, 0.112945676
  %v541 = vmul.f32 %v523, %v540
  %v542 = vadd.f32 %v541, 0.4994258
  %v543 = vmul.f32 %v523, %v542
  %v544 = vadd.f32 %v543, 1.0
  %v545 = vrcp.pop %v544
  %v546 = vmul.f32 %v544, %v545
  %v547 = vsub.f32 1.0, %v546
  %v548 = vmul.f32 %v545, %v547
  %v549 = vadd.f32 %v545, %v548
  %vm550 = vweird.f32 %v544
  %vm551 = vweird.f32 %v545
  %vm552 = vmor %vm550, %vm551
  %v553 = vsel %vm552, %v545, %v549
  %v554 = vand.u32 2147483647, %v544
  %vm555 = vcmp.eq.f32.partialorder %v554, 8.507059e+37
  %v556 = vand.u32 %v544, 2147483648
  %v557 = vor.u32 1.1754944e-38, %v556
  %v558 = vsel %vm555, %v557, %v553
  %v559 = vmul.f32 %v534, %v558
  %v560 = vmin.f32 %v559, 1.0
  %v561 = vmax.f32 %v560, -1.0
  %v562 = vadd.f32 %v521, 1.0
  %v563 = vadd.f32 %v561, 1.0
  %v564 = vmul.f32 %v478, %v562
  %v565 = vmul.f32 %v479, %v563
  %v566 = vpack.c.bf16 %v565, %v564
  %v567 = vld [vmem:[%s10] sm:$0xf]
  %v568 = vld [vmem:[%s10 + $0x4] sm:$0xf]
  %v569 = vld [vmem:[%s10 + $0x8] sm:$0xf]
  %v570 = vld [vmem:[%s10 + $0xc] sm:$0xf]
  %v571 = vld [vmem:[%s10 + $0x10] sm:$0xf]
  %v572 = vld [vmem:[%s10 + $0x14] sm:$0xf]
  %v573 = vld [vmem:[%s10 + $0x18] sm:$0xf]
  %v574 = vld [vmem:[%s10 + $0x1c] sm:$0xf]
  %v575 = vld [vmem:[%s11] sm:$0x1]
  %v577 = vperm.slane %v575, 0
  %v587 = vunpack.c.l.b16 %v567
  %v588 = vunpack.c.l.b16 %v568
  %v589 = vunpack.c.l.b16 %v569
  %v590 = vunpack.c.l.b16 %v570
  %v591 = vunpack.c.l.b16 %v571
  %v592 = vunpack.c.l.b16 %v572
  %v593 = vunpack.c.l.b16 %v573
  %v594 = vunpack.c.l.b16 %v574
  %v595 = vpack.c.b16 %v588, %v587
  %v596 = vpack.c.b16 %v590, %v589
  %v597 = vpack.c.b16 %v592, %v591
  %v598 = vpack.c.b16 %v594, %v593
  %vm603 = vcmask 523264
  %v605 = vsel %vm603, %v566, 0
  %607 = vmatpush.bf16.msra.mxu0 0
  %608 = vmatpush.bf16.msra.mxu0 0
  %609 = vmatpush.bf16.msra.mxu0 0
  %610 = vmatpush.bf16.msra.mxu0 0
  %611 = vmatpush.bf16.msra.mxu0 %v598
  %612 = vmatpush.bf16.msra.mxu0 %v597
  %613 = vmatpush.bf16.msra.mxu0 %v596
  %614 = vmatpush.bf16.msra.mxu0 %v595
  %615 = vmatmul.bf16.gmra.mxu0 %v605
  %v616 = vpop.f32.mrf.mxu0
  %v617 = vadd.f32 %v577, %v616
  %v618 = vpop.f32.mrf.mxu0
  %v619 = vadd.f32 %v577, %v618
  %620 = vdwg.mxu0
  %v621 = vadd.f32 %v438, %v617
  %v622 = vadd.f32 %v439, %v619
  %v623 = vld [vmem:[%s12] sm:$0x1]
  %v624 = vld [vmem:[%s13] sm:$0x1]
  %v625 = vsel %vm72, %v621, 0.0
  %626 = vadd.xlane.f32.xlu0 %v625
  %v627 = vpop.xlane.xlu0 %626
  %v628 = vsel %vm72, %v622, 0.0
  %629 = vadd.xlane.f32.xlu0 %v628
  %v630 = vpop.xlane.xlu0 %629
  %v631 = vmul.f32 %v627, %v391
  %v632 = vmul.f32 %v630, %v391
  %v633 = vsub.f32 %v621, %v631
  %v634 = vsub.f32 %v622, %v632
  %v635 = vmul.f32 %v633, %v633
  %v636 = vmul.f32 %v634, %v634
  %v637 = vsel %vm72, %v635, 0.0
  %638 = vadd.xlane.f32.xlu0 %v637
  %v639 = vpop.xlane.xlu0 %638
  %v640 = vsel %vm72, %v636, 0.0
  %641 = vadd.xlane.f32.xlu0 %v640
  %v642 = vpop.xlane.xlu0 %641
  %v643 = vmul.f32 %v639, %v391
  %v644 = vmul.f32 %v642, %v391
  %v645 = vadd.f32 %v643, 1e-05
  %v646 = vadd.f32 %v644, 1e-05
  %v647 = vrsqrt.pop %v645
  %v648 = vmul.f32 %v647, %v645
  %v649 = vmul.f32 %v648, %v647
  %v650 = vmul.f32 0.5, %v649
  %v651 = vsub.f32 1.5, %v650
  %v652 = vmul.f32 %v647, %v651
  %vm653 = vweird.f32 %v645
  %vm654 = vweird.f32 %v647
  %vm655 = vmor %vm653, %vm654
  %v656 = vsel %vm655, %v647, %v652
  %v657 = vrsqrt.pop %v646
  %v658 = vmul.f32 %v657, %v646
  %v659 = vmul.f32 %v658, %v657
  %v660 = vmul.f32 0.5, %v659
  %v661 = vsub.f32 1.5, %v660
  %v662 = vmul.f32 %v657, %v661
  %vm663 = vweird.f32 %v646
  %vm664 = vweird.f32 %v657
  %vm665 = vmor %vm663, %vm664
  %v666 = vsel %vm665, %v657, %v662
  %v667 = vmul.f32 %v633, %v656
  %v668 = vmul.f32 %v634, %v666
  %v670 = vperm.slane %v623, 0
  %v672 = vmul.f32 %v667, %v670
  %v673 = vmul.f32 %v668, %v670
  %v675 = vperm.slane %v624, 0
  %v677 = vadd.f32 %v672, %v675
  %v678 = vadd.f32 %v673, %v675
  %679 = vst.msk [vmem:[%s14] sm:$0xff] %vm72, %v677
  %680 = vst.msk [vmem:[%s14 + $0x8] sm:$0xff] %vm72, %v678
  // Predicated region
  $region58: #{roberta_classifier_forward.5} parent=0 // pred_check
    _
  $region59: #{roberta_classifier_forward.5} parent=0 // pred_check_branch
    %682 = sbr.rel (0) target = $region61
  $region60: #{roberta_classifier_forward.5} parent=0 // pred_region
    _
  $region61: #{roberta_classifier_forward.5} parent=0 // pred_fallthru
    _
  // Predicated region
  $region62: #{roberta_classifier_forward.5} parent=0 // pred_check
    _
  $region63: #{roberta_classifier_forward.5} parent=0 // pred_check_branch
    %684 = sbr.rel (0) target = $region65
  $region64: #{roberta_classifier_forward.5} parent=0 // pred_region
    _
  $region65: #{roberta_classifier_forward.5} parent=0 // pred_fallthru
    _

</llo_original>
